<compile_context>
chip_gen: v7x
topology: tpu7x:2x2x1
jax: 0.10.0
libtpu: 0.0.40
codegen_flags: <defaults>
</compile_context>

<pallas_src>
import functools

import jax
import jax.numpy as jnp
import numpy as np
from jax.experimental import pallas as pl
from jax.experimental.pallas import tpu as pltpu


def _build_pool_matrix(H, W, dim):
    """P[h*W + w, bi*dim + bj] = 1/(kh*kw) iff (h, w) lies in pooling bin (bi, bj)."""
    kh, kw = H // dim, W // dim
    hh, ww = np.meshgrid(np.arange(H), np.arange(W), indexing="ij")
    bin_idx = (hh // kh) * dim + (ww // kw)                      # (H, W)
    onehot = bin_idx.reshape(H * W, 1) == np.arange(dim * dim)[None, :]
    return jnp.asarray(onehot.astype(np.float32) / float(kh * kw))


def _adaptive_normalize_kernel(x_ref, p_ref, o_ref, *, normalize):
    # x_ref: (B_blk, C, H*W)   p_ref: (H*W, dim*dim)   o_ref: (B_blk, C, dim*dim)
    b_blk = x_ref.shape[0]
    p = p_ref[...]                                               # (S, K), f32
    for bb in range(b_blk):                                      # static unroll (<= 16)
        x = x_ref[bb].astype(jnp.float32)                        # (C, S), lane-dense
        # Adaptive average pooling == one MXU matmul.
        pooled = jnp.dot(x, p, preferred_element_type=jnp.float32)   # (C, K)
        if normalize:
            ss = jnp.sum(pooled * pooled, axis=1, keepdims=True)     # (C, 1)
            total = jnp.sum(ss, axis=0, keepdims=True)               # (1, 1)
            # Matches torch `flat / flat.norm()` exactly (no epsilon).
            pooled = pooled * jax.lax.rsqrt(total)
        o_ref[bb] = pooled.astype(o_ref.dtype)


def adaptive_normalize(x, *, dim, normalize=True):
    """x: (N, C, H, W) float (f32 or bf16), with H % dim == 0 and W % dim == 0."""
    N, C, H, W = x.shape
    assert x.ndim == 4 and W > 1, "kernel implements the 4-D (pooled) path"
    assert H % dim == 0 and W % dim == 0, "uniform pooling bins required"
    # TODO(synk): the 2-D / W==1 pass-through branch of the module (no pooling)
    # is trivial and is not routed through this kernel.
    # TODO(synk): PyTorch AdaptiveAvgPool2d's non-divisible (variable-window)
    # case is not implemented (guarded by the assert above).

    S, K = H * W, dim * dim
    x_flat = x.reshape(N, C, S)                  # H*W onto the lane axis (no copy)
    pool_mat = _build_pool_matrix(H, W, dim)     # (S, K)

    # Batch several batch elements per grid step (~4 MiB input blocks, capped at
    # 16 to bound the unroll), preferring a divisor of N with >= 2 grid steps
    # so v7x's second TensorCore is not idle.
    itemsize = jnp.dtype(x.dtype).itemsize
    per_elem = C * S * itemsize
    b_blk = int(max(1, min(N, 16, (4 << 20) // max(per_elem, 1))))
    while b_blk > 1 and (N % b_blk != 0 or N // b_blk < 2):
        b_blk -= 1
    grid = (N // b_blk,)

    # VMEM budget: double-buffered input/output blocks + pooling matrix, with
    # headroom; stays within v5e's 16 MiB default scope and v7x's 64 MiB VMEM.
    # TODO(synk): for very large C*H*W (block > ~16 MiB) add a C-tiling grid
    # axis and hoist the tiny divide-by-norm out of the kernel.
    blk_bytes = b_blk * C * S * itemsize + b_blk * C * K * 4 + S * K * 4
    vmem_limit = int(min(max(2 * blk_bytes + (2 << 20), 16 << 20), 48 << 20))

    kernel = functools.partial(_adaptive_normalize_kernel, normalize=normalize)
    out = pl.pallas_call(
        kernel,
        out_shape=jax.ShapeDtypeStruct((N, C, K), jnp.float32),
        grid_spec=pltpu.PrefetchScalarGridSpec(
            num_scalar_prefetch=0,
            grid=grid,
            in_specs=[
                pl.BlockSpec((b_blk, C, S), lambda b: (b, 0, 0)),
                pl.BlockSpec((S, K), lambda b: (0, 0)),
            ],
            out_specs=pl.BlockSpec((b_blk, C, K), lambda b: (b, 0, 0)),
        ),
        compiler_params=pltpu.CompilerParams(
            dimension_semantics=("parallel",),
            vmem_limit_bytes=vmem_limit,
        ),
    )(x_flat, pool_mat)
    # (N, C, dim*dim) row-major == torch's .view(N, -1) ordering of (N,C,dim,dim).
    return out.reshape(N, C * K, 1, 1)


if __name__ == "__main__":
    key = jax.random.PRNGKey(0)
    N, C, H, W = 2, 4, 16, 16
    POOL_DIM = 2
    x = jax.random.normal(key, (N, C, H, W), dtype=jnp.float32)

    out = adaptive_normalize(x, dim=POOL_DIM, normalize=True)
    out = jax.block_until_ready(out)

    # Pure-JAX reference for correctness.
    kh, kw = H // POOL_DIM, W // POOL_DIM
    pooled_ref = x.reshape(N, C, POOL_DIM, kh, POOL_DIM, kw).mean(axis=(3, 5))
    flat_ref = pooled_ref.reshape(N, -1)
    nrm = jnp.sqrt(jnp.sum(flat_ref * flat_ref, axis=1, keepdims=True))
    ref = (flat_ref / nrm).reshape(N, -1, 1, 1)

    assert out.shape == (N, C * POOL_DIM * POOL_DIM, 1, 1), out.shape
    assert jnp.allclose(out, ref, atol=1e-5, rtol=1e-5)
    print("KERNEL_OK")
</pallas_src>

<mosaic_0001>
module attributes {stable_mosaic.version = 11 : i64} {
  func.func @_adaptive_normalize_kernel(%arg0: i32, %arg1: memref<1x4x256xf32, #tpu.memory_space<vmem>>, %arg2: memref<256x4xf32, #tpu.memory_space<vmem>>, %arg3: memref<1x4x4xf32, #tpu.memory_space<vmem>>) attributes {dimension_semantics = [#tpu.dimension_semantics<parallel>], iteration_bounds = array<i64: 2>, scalar_prefetch = 0 : i64, scratch_operands = 0 : i64, tpu.core_type = #tpu.core_type<tc>, window_params = [{transform_indices = @transform_0, window_bounds = array<i64: 1, 4, 256>}, {pipeline_mode = #tpu.pipeline_mode<synchronous>, transform_indices = @transform_1, window_bounds = array<i64: 256, 4>}, {transform_indices = @transform_2, window_bounds = array<i64: 1, 4, 4>}]} {
    %c0 = arith.constant 0 : index
    %c0_0 = arith.constant 0 : index
    %0 = vector.load %arg2[%c0, %c0_0] : memref<256x4xf32, #tpu.memory_space<vmem>>, vector<256x4xf32>
    %c0_1 = arith.constant 0 : index
    %c0_2 = arith.constant 0 : index
    %c0_3 = arith.constant 0 : index
    %1 = vector.load %arg1[%c0_1, %c0_2, %c0_3] : memref<1x4x256xf32, #tpu.memory_space<vmem>>, vector<1x4x256xf32>
    %2 = vector.shape_cast %1 : vector<1x4x256xf32> to vector<4x256xf32>
    %cst = arith.constant dense<0.000000e+00> : vector<4x4xf32>
    %3 = tpu.matmul %2, %0, %cst {dimension_numbers = #tpu.dot_dimension_numbers<[1], [0], [0], [1], [0, 0, 1, 1], [], []>} : vector<4x256xf32>, vector<256x4xf32>, vector<4x4xf32> -> vector<4x4xf32>
    %4 = arith.mulf %3, %3 : vector<4x4xf32>
    %cst_4 = arith.constant dense<0.000000e+00> : vector<4xf32>
    %5 = vector.multi_reduction <add>, %4, %cst_4 [1] : vector<4x4xf32> to vector<4xf32>
    %6 = vector.shape_cast %5 : vector<4xf32> to vector<4x1xf32>
    %cst_5 = arith.constant dense<0.000000e+00> : vector<1xf32>
    %7 = vector.multi_reduction <add>, %6, %cst_5 [0] : vector<4x1xf32> to vector<1xf32>
    %8 = vector.shape_cast %7 : vector<1xf32> to vector<1x1xf32>
    %9 = math.rsqrt %8 : vector<1x1xf32>
    %10 = vector.broadcast %9 : vector<1x1xf32> to vector<4x4xf32>
    %11 = arith.mulf %3, %10 : vector<4x4xf32>
    %c0_6 = arith.constant 0 : index
    %c0_7 = arith.constant 0 : index
    %c0_8 = arith.constant 0 : index
    %12 = vector.load %arg3[%c0_6, %c0_7, %c0_8] : memref<1x4x4xf32, #tpu.memory_space<vmem>>, vector<1x4x4xf32>
    %13 = vector.shape_cast %12 : vector<1x4x4xf32> to vector<4x4xf32>
    %14 = vector.shape_cast %11 : vector<4x4xf32> to vector<1x4x4xf32>
    tpu.vector_store %arg3[%c0_6, %c0_7, %c0_8], %14 {strides = array<i32>} : memref<1x4x4xf32, #tpu.memory_space<vmem>>, vector<1x4x4xf32>,
    return
  }
  func.func @transform_0(%arg0: i32) -> (i32, i32, i32) {
    %c0_i32 = arith.constant 0 : i32
    %c0_i32_0 = arith.constant 0 : i32
    %c0_i32_1 = arith.constant 0 : i32
    return %arg0, %c0_i32, %c0_i32_0 : i32, i32, i32
  }
  func.func @transform_1(%arg0: i32) -> (i32, i32) {
    %c0_i32 = arith.constant 0 : i32
    %c0_i32_0 = arith.constant 0 : i32
    %c0_i32_1 = arith.constant 0 : i32
    return %c0_i32, %c0_i32_0 : i32, i32
  }
  func.func @transform_2(%arg0: i32) -> (i32, i32, i32) {
    %c0_i32 = arith.constant 0 : i32
    %c0_i32_0 = arith.constant 0 : i32
    %c0_i32_1 = arith.constant 0 : i32
    return %arg0, %c0_i32, %c0_i32_0 : i32, i32, i32
  }
}

</mosaic_0001>

<llo_original>
// kernel: tpu_custom_call.1
$region0: #{tpu_custom_call.1}
  #allocation0 [shape = 'u32[]', space=smem, size = 0x4, offset = 0x4, fixed_abs, tag = 'smem constant byte address 0x4 - core index']
  #allocation1 [shape = 'u32[144,128]{1,0:T(1,128)}', space=vmem, size = 0x12000, scoped, tag = 'internal scratch']
  %s0 = inlined_call_operand.vmem [shape: f32[2,4,256], index: 0, kind: input, shape index: {}]
  %s1 = inlined_call_operand.vmem [shape: f32[256,4], index: 1, kind: input, shape index: {}]
  %s2 = inlined_call_operand.hbm [shape: f32[2,4,4], index: 2, kind: output, shape index: {}]
  %s3 = sld [smem:[#allocation0]]
  $region41: #{tpu_custom_call.1} parent=0
    _
  %s5 = ssub.s32 1, %s3
  %s6 = scalar_select 0, %s5, %s3
  $region1: #{tpu_custom_call.1} parent=0
    #allocation2 [shape = 'u8[4096]{0}', space=vmem, size = 0x1000, scoped, tag = 'output window, operand 0']
    #allocation3 [shape = 's32[2]{0}', space=sflag, size = 0x8, scoped, tag = 'scoped memory for tpu_custom_call.1']
    %7 = vsyncpa [#allocation3], 0
    %s8 = scalar_lea.sflag [#allocation3], 1
    %9 = vsyncpa %s8, 0
    loop: start=0, step=1, limit=4
    $region2: #{tpu_custom_call.1} parent=1 // loop_pre_header
      _
    $region3: #{tpu_custom_call.1} parent=1 // loop_header
      %s11 = sphi 0, %s15
      %p12 = scmp.ge.s32.totalorder %s11, 4
      %s21 = sphi 0, %s23
      %s24 = sphi 0, %s21
      %s25 = sphi 0, %s24
      %s41 = sphi 0, %s25
      %s45 = sphi 0, %s45
      %s47 = sphi 0, %s45
      %s48 = sphi 0, %s47
      %s62 = sphi 0, %s48
      %s68 = sphi 0, %s70
      %s71 = sphi 0, %s68
      %s72 = sphi 0, %s71
      %s88 = sphi 0, %s72
    $region4: #{tpu_custom_call.1} parent=1 // loop_header_branch
      %14 = sbr.rel (%p12) target = $region8
    $region5: #{tpu_custom_call.1} parent=1 // loop_body
      %s16 = ssub.s32 %s11, 1
      %s17 = ssub.s32 %s11, 2
      %s18 = sadd.s32 %s11, 1
      %s19 = ssub.s32 %s11, %s18
      %p20 = scmp.eq.s32.totalorder %s19, 0
      %s22 = sadd.s32 %s21, 1
      %s23 = scalar_select %p20, %s21, %s22
      %p26 = pneg %p20
      %p27 = scmp.eq.s32.totalorder %s11, 1
      %p28 = por %p26, %p27
      %p29 = scmp.ne.s32.totalorder %s21, %s24
      %p30 = scmp.eq.s32.totalorder %s11, 0
      %p31 = por %p29, %p30
      %p32 = scmp.ne.s32.totalorder %s21, %s24
      %p33 = scmp.eq.s32.totalorder %s16, 1
      %p34 = por %p32, %p33
      %p35 = scmp.ne.s32.totalorder %s24, %s25
      %p36 = scmp.eq.s32.totalorder %s16, 0
      %p37 = por %p35, %p36
      %p38 = scmp.ne.s32.totalorder %s24, %s25
      %p39 = scmp.eq.s32.totalorder %s17, 1
      %p40 = por %p38, %p39
      %p42 = scmp.ne.s32.totalorder %s25, %s41
      %p43 = scmp.eq.s32.totalorder %s17, 0
      %p44 = por %p42, %p43
      %s46 = sadd.s32 %s45, 1
      %p49 = scmp.eq.s32.totalorder %s11, 1
      %p50 = scmp.ne.s32.totalorder %s45, %s47
      %p51 = scmp.eq.s32.totalorder %s11, 0
      %p52 = por %p50, %p51
      %p53 = scmp.ne.s32.totalorder %s45, %s47
      %p54 = scmp.eq.s32.totalorder %s16, 1
      %p55 = por %p53, %p54
      %p56 = scmp.ne.s32.totalorder %s47, %s48
      %p57 = scmp.eq.s32.totalorder %s16, 0
      %p58 = por %p56, %p57
      %p59 = scmp.ne.s32.totalorder %s47, %s48
      %p60 = scmp.eq.s32.totalorder %s17, 1
      %p61 = por %p59, %p60
      %p63 = scmp.ne.s32.totalorder %s48, %s62
      %p64 = scmp.eq.s32.totalorder %s17, 0
      %p65 = por %p63, %p64
      %s66 = ssub.s32 %s11, %s18
      %p67 = scmp.eq.s32.totalorder %s66, 0
      %s69 = sadd.s32 %s68, 1
      %s70 = scalar_select %p67, %s68, %s69
      %p73 = pneg %p67
      %p74 = scmp.eq.s32.totalorder %s11, 1
      %p75 = por %p73, %p74
      %p76 = scmp.ne.s32.totalorder %s68, %s71
      %p77 = scmp.eq.s32.totalorder %s11, 0
      %p78 = por %p76, %p77
      %p79 = scmp.ne.s32.totalorder %s68, %s71
      %p80 = scmp.eq.s32.totalorder %s16, 1
      %p81 = por %p79, %p80
      %p82 = scmp.ne.s32.totalorder %s71, %s72
      %p83 = scmp.eq.s32.totalorder %s16, 0
      %p84 = por %p82, %p83
      %p85 = scmp.ne.s32.totalorder %s71, %s72
      %p86 = scmp.eq.s32.totalorder %s17, 1
      %p87 = por %p85, %p86
      %p89 = scmp.ne.s32.totalorder %s72, %s88
      %p90 = scmp.eq.s32.totalorder %s17, 0
      %p91 = por %p89, %p90
      %p92 = scmp.le.s32.totalorder 1, %s11
      %p93 = scmp.lt.s32.totalorder %s11, 3
      %p94 = pnand %p92, %p93
      %p95 = pneg %p94
      // Predicated region
      $region9: #{tpu_custom_call.1} parent=5 // pred_check
        _
      $region10: #{tpu_custom_call.1} parent=5 // pred_check_branch
        %97 = sbr.rel (%p94) target = $region12
      $region11: #{tpu_custom_call.1} parent=5 // pred_region
        %s98 = ssub.s32 %s11, 1
        // Predicated region
        $region13: #{tpu_custom_call.1} parent=11 // pred_check
          %p99 = pneg %p58
        $region14: #{tpu_custom_call.1} parent=11 // pred_check_branch
          %101 = sbr.rel (%p99) target = $region16
        $region15: #{tpu_custom_call.1} parent=11 // pred_region
          _
        $region16: #{tpu_custom_call.1} parent=11 // pred_fallthru
          _
      $region12: #{tpu_custom_call.1} parent=5 // pred_fallthru
        _
      %p102 = scmp.lt.s32.totalorder %s11, 2
      // Predicated region
      $region17: #{tpu_custom_call.1} parent=5 // pred_check
        %p103 = pneg %p102
      $region18: #{tpu_custom_call.1} parent=5 // pred_check_branch
        %105 = sbr.rel (%p103) target = $region20
      $region19: #{tpu_custom_call.1} parent=5 // pred_region
        // Predicated region
        $region21: #{tpu_custom_call.1} parent=19 // pred_check
          %p106 = pneg %p31
        $region22: #{tpu_custom_call.1} parent=19 // pred_check_branch
          %108 = sbr.rel (%p106) target = $region24
        $region23: #{tpu_custom_call.1} parent=19 // pred_region
          %p109 = scmp.lt.s32.totalorder %s11, 1
          %s110 = scalar_select %p109, %s11, 1
          %s111 = smul.addr %s110, 2
          %s112 = smul.addr %s111, 4
          %s113 = scalar_lea.vmem %s0, %s112
        $region24: #{tpu_custom_call.1} parent=19 // pred_fallthru
          _
      $region20: #{tpu_custom_call.1} parent=5 // pred_fallthru
        _
      %p114 = scmp.le.s32.totalorder 1, %s11
      %p115 = scmp.lt.s32.totalorder %s11, 3
      %p116 = pnand %p114, %p115
      %p117 = pneg %p116
      // Predicated region
      $region25: #{tpu_custom_call.1} parent=5 // pred_check
        _
      $region26: #{tpu_custom_call.1} parent=5 // pred_check_branch
        %119 = sbr.rel (%p116) target = $region28
      $region27: #{tpu_custom_call.1} parent=5 // pred_region
        %s120 = ssub.s32 %s11, 1
        %p121 = scmp.lt.s32.totalorder %s16, 1
        %s122 = scalar_select %p121, %s16, 1
        %s123 = smul.addr %s122, 2
        %s124 = smul.addr %s123, 4
        %s125 = scalar_lea.vmem %s0, %s124
        %p126 = pneg %p37
        %p127 = pneg %p34
        %p128 = pneg %p58
        %p129 = pneg %p55
        %p130 = pneg %p84
        %p131 = pneg %p81
        %s132 = sand.u32 %s71, 1
        %s133 = scalar_lea.sflag [#allocation3], %s132
        %s134 = sand.u32 %s71, 1
        %s135 = smul.addr %s134, 4
        %s136 = scalar_lea.vmem [#allocation2], %s135
        %p137 = scmp.lt.s32.totalorder %s16, 1
        %s138 = scalar_select %p137, %s16, 1
        %s139 = smul.addr %s138, 2
        %s140 = smul.addr %s139, 4
        %s141 = scalar_lea.vmem %s0, %s140
        %v142 = vld [vmem:[%s1] sm:$0xff]
        %v143 = vld [vmem:[%s1 + $0x8] sm:$0xff]
        %v144 = vld [vmem:[%s1 + $0x10] sm:$0xff]
        %v145 = vld [vmem:[%s1 + $0x18] sm:$0xff]
        %v146 = vld [vmem:[%s1 + $0x20] sm:$0xff]
        %v147 = vld [vmem:[%s1 + $0x28] sm:$0xff]
        %v148 = vld [vmem:[%s1 + $0x30] sm:$0xff]
        %v149 = vld [vmem:[%s1 + $0x38] sm:$0xff]
        %v150 = vld [vmem:[%s1 + $0x40] sm:$0xff]
        %v151 = vld [vmem:[%s1 + $0x48] sm:$0xff]
        %v152 = vld [vmem:[%s1 + $0x50] sm:$0xff]
        %v153 = vld [vmem:[%s1 + $0x58] sm:$0xff]
        %v154 = vld [vmem:[%s1 + $0x60] sm:$0xff]
        %v155 = vld [vmem:[%s1 + $0x68] sm:$0xff]
        %v156 = vld [vmem:[%s1 + $0x70] sm:$0xff]
        %v157 = vld [vmem:[%s1 + $0x78] sm:$0xff]
        %v158 = vld [vmem:[%s1 + $0x80] sm:$0xff]
        %v159 = vld [vmem:[%s1 + $0x88] sm:$0xff]
        %v160 = vld [vmem:[%s1 + $0x90] sm:$0xff]
        %v161 = vld [vmem:[%s1 + $0x98] sm:$0xff]
        %v162 = vld [vmem:[%s1 + $0xa0] sm:$0xff]
        %v163 = vld [vmem:[%s1 + $0xa8] sm:$0xff]
        %v164 = vld [vmem:[%s1 + $0xb0] sm:$0xff]
        %v165 = vld [vmem:[%s1 + $0xb8] sm:$0xff]
        %v166 = vld [vmem:[%s1 + $0xc0] sm:$0xff]
        %v167 = vld [vmem:[%s1 + $0xc8] sm:$0xff]
        %v168 = vld [vmem:[%s1 + $0xd0] sm:$0xff]
        %v169 = vld [vmem:[%s1 + $0xd8] sm:$0xff]
        %v170 = vld [vmem:[%s1 + $0xe0] sm:$0xff]
        %v171 = vld [vmem:[%s1 + $0xe8] sm:$0xff]
        %v172 = vld [vmem:[%s1 + $0xf0] sm:$0xff]
        %v173 = vld [vmem:[%s1 + $0xf8] sm:$0xff]
        %v174 = vld [vmem:[%s141] sm:$0xff]
        %v176 = vcombine.high %v174, %v174
        %178 = vmatprep.subr.mxu0 0.0
        %179 = vmatpush1.msra.mxu0 %v142
        %180 = vmatprep.subr.mxu0 0.0
        %181 = vmatpush1.msra.mxu0 %v143
        %182 = vmatprep.subr.mxu0 0.0
        %183 = vmatpush1.msra.mxu0 %v144
        %184 = vmatprep.subr.mxu0 0.0
        %185 = vmatpush1.msra.mxu0 %v145
        %186 = vmatprep.subr.mxu0 0.0
        %187 = vmatpush1.msra.mxu0 %v146
        %188 = vmatprep.subr.mxu0 0.0
        %189 = vmatpush1.msra.mxu0 %v147
        %190 = vmatprep.subr.mxu0 0.0
        %191 = vmatpush1.msra.mxu0 %v148
        %192 = vmatprep.subr.mxu0 0.0
        %193 = vmatpush1.msra.mxu0 %v149
        %194 = vmatprep.subr.mxu0 0.0
        %195 = vmatpush1.msra.mxu0 %v150
        %196 = vmatprep.subr.mxu0 0.0
        %197 = vmatpush1.msra.mxu0 %v151
        %198 = vmatprep.subr.mxu0 0.0
        %199 = vmatpush1.msra.mxu0 %v152
        %200 = vmatprep.subr.mxu0 0.0
        %201 = vmatpush1.msra.mxu0 %v153
        %202 = vmatprep.subr.mxu0 0.0
        %203 = vmatpush1.msra.mxu0 %v154
        %204 = vmatprep.subr.mxu0 0.0
        %205 = vmatpush1.msra.mxu0 %v155
        %206 = vmatprep.subr.mxu0 0.0
        %207 = vmatpush1.msra.mxu0 %v156
        %208 = vmatprep.subr.mxu0 0.0
        %209 = vmatpush1.msra.mxu0 %v157
        %210 = vmatprep.subr.mxu0 0.0
        %211 = vmatpush1.msra.mxu0 %v158
        %212 = vmatprep.subr.mxu0 0.0
        %213 = vmatpush1.msra.mxu0 %v159
        %214 = vmatprep.subr.mxu0 0.0
        %215 = vmatpush1.msra.mxu0 %v160
        %216 = vmatprep.subr.mxu0 0.0
        %217 = vmatpush1.msra.mxu0 %v161
        %218 = vmatprep.subr.mxu0 0.0
        %219 = vmatpush1.msra.mxu0 %v162
        %220 = vmatprep.subr.mxu0 0.0
        %221 = vmatpush1.msra.mxu0 %v163
        %222 = vmatprep.subr.mxu0 0.0
        %223 = vmatpush1.msra.mxu0 %v164
        %224 = vmatprep.subr.mxu0 0.0
        %225 = vmatpush1.msra.mxu0 %v165
        %226 = vmatprep.subr.mxu0 0.0
        %227 = vmatpush1.msra.mxu0 %v166
        %228 = vmatprep.subr.mxu0 0.0
        %229 = vmatpush1.msra.mxu0 %v167
        %230 = vmatprep.subr.mxu0 0.0
        %231 = vmatpush1.msra.mxu0 %v168
        %232 = vmatprep.subr.mxu0 0.0
        %233 = vmatpush1.msra.mxu0 %v169
        %234 = vmatprep.subr.mxu0 0.0
        %235 = vmatpush1.msra.mxu0 %v170
        %236 = vmatprep.subr.mxu0 0.0
        %237 = vmatpush1.msra.mxu0 %v171
        %238 = vmatprep.subr.mxu0 0.0
        %239 = vmatpush1.msra.mxu0 %v172
        %240 = vmatprep.subr.mxu0 0.0
        %241 = vmatpush1.msra.mxu0 %v173
        %242 = vmatprep.mubr.f32.mxu0 %v176
        %243 = vmatmul.mubr.f32.gmra.mrb[0].mxu0 %v174
        %v244 = vpop.f32.mrb[0].mxu0
        %v245 = vadd.f32 0.0, %v244
        %v246 = vpop.f32.mrb[0].mxu0
        %247 = vdwg.mxu0
        %v248 = vmul.f32 %v245, %v245
        %vm249 = vcmask 27648
        %v250 = vsel %vm249, %v248, 0.0
        %251 = vadd.xlane.f32.xlu0 %v250
        %v252 = vpop.xlane.xlu0 %251
        %vm253 = vcmask 1043456
        %v254 = vsel %vm253, %v252, 0.0
        %v255 = vrot.slane %v254, 4
        %v256 = vadd.f32 %v254, %v255
        %v257 = vrot.slane %v256, 2
        %v258 = vadd.f32 %v256, %v257
        %v259 = vrot.slane %v258, 1
        %v260 = vadd.f32 %v258, %v259
        %v261 = vrsqrt.pop %v260
        %v262 = vmul.f32 %v245, %v261
        %263 = vst.msk [vmem:[%s136] sm:$0xf] %vm249, %v262
        %s264 = sand.u32 %s71, 1
        %s265 = scalar_lea.sflag [#allocation3], %s264
        %s266 = sand.u32 %s71, 1
        %s267 = smul.addr %s266, 4
        %s268 = scalar_lea.vmem [#allocation2], %s267
        // Predicated region
        $region29: #{tpu_custom_call.1} parent=27 // pred_check
          %p269 = pneg %p81
        $region30: #{tpu_custom_call.1} parent=27 // pred_check_branch
          %271 = sbr.rel (%p269) target = $region32
        $region31: #{tpu_custom_call.1} parent=27 // pred_region
          %s273 = ssub.s32 64, 64
          %274 = vsyncadd %s265, %s273
          %s275 = smul.addr %s16, 64
          %s276 = scalar_lea.hbm %s2, %s275
          %s278 = sshll.u32 %s268, 4
          %s279 = int_to_ptr.vmem [resolvable:$true] %s278
          %281 = dma.vmem_to_hbm [thread:$0]  %s279, 64, %s276, %s265
        $region32: #{tpu_custom_call.1} parent=27 // pred_fallthru
          _
      $region28: #{tpu_custom_call.1} parent=5 // pred_fallthru
        _
      %p282 = scmp.le.s32.totalorder 2, %s11
      // Predicated region
      $region33: #{tpu_custom_call.1} parent=5 // pred_check
        %p283 = pneg %p282
      $region34: #{tpu_custom_call.1} parent=5 // pred_check_branch
        %285 = sbr.rel (%p283) target = $region36
      $region35: #{tpu_custom_call.1} parent=5 // pred_region
        %s286 = ssub.s32 %s11, 2
        // Predicated region
        $region37: #{tpu_custom_call.1} parent=35 // pred_check
          %p287 = pneg %p87
        $region38: #{tpu_custom_call.1} parent=35 // pred_check_branch
          %289 = sbr.rel (%p287) target = $region40
        $region39: #{tpu_custom_call.1} parent=35 // pred_region
          %s290 = sand.u32 %s72, 1
          %s291 = scalar_lea.sflag [#allocation3], %s290
          %s292 = sand.u32 %s72, 1
          %s293 = smul.addr %s292, 4
          %s294 = scalar_lea.vmem [#allocation2], %s293
          %295 = dma.done %s291, 64
        $region40: #{tpu_custom_call.1} parent=35 // pred_fallthru
          _
      $region36: #{tpu_custom_call.1} parent=5 // pred_fallthru
        _
    $region6: #{tpu_custom_call.1} parent=1 // loop_footer
      %s15 = sadd.s32 1, %s11
    $region7: #{tpu_custom_call.1} parent=1 // loop_footer_branch
      %10 = sbr.rel target = $region3
    $region8: #{tpu_custom_call.1} parent=1 // loop_exit
      _
    %296 = vsyncpa [#allocation3], 1
    %s297 = scalar_lea.sflag [#allocation3], 1
    %298 = vsyncpa %s297, 1

</llo_original>
